<compile_context>
chip_gen: v5e
topology: v5e:2x2
jax: 0.10.0
libtpu: 0.0.40
codegen_flags: <defaults>
</compile_context>

<pallas_src>
import jax
import jax.numpy as jnp
from jax.experimental import pallas as pl
from jax.experimental.pallas import tpu as pltpu

# Flat parameter layout (SMEM, 47 f32 scalars), torch nn.Linear convention
# (weights are (out_features, in_features), row-major flattened).
_W1, _B1 = 0, 20          # w1: (5,4) -> 20,  b1: (5,)
_W2, _B2 = 25, 40         # w2: (3,5) -> 15,  b2: (3,)
_W3, _B3 = 43, 46         # w3: (1,3) -> 3,   b3: (1,)
_NPARAMS = 47


def _mlp_kernel(p_ref, x_ref, o_ref):
    # x_ref: (4, TR, 128) -- four dense (TR,128) feature planes for this batch tile
    # p_ref: (47,) in SMEM -- all weights & biases as scalars
    # o_ref: (TR, 128)    -- dense output plane
    xs = [x_ref[k] for k in range(4)]           # each (TR, 128) f32

    # fc1 (4 -> 5) + ReLU : unrolled VPU broadcast-multiply-accumulate
    h1 = []
    for j in range(5):
        acc = p_ref[_W1 + j * 4] * xs[0]
        for k in range(1, 4):
            acc = acc + p_ref[_W1 + j * 4 + k] * xs[k]
        h1.append(jnp.maximum(acc + p_ref[_B1 + j], 0.0))

    # fc2 (5 -> 3) + ReLU
    h2 = []
    for j in range(3):
        acc = p_ref[_W2 + j * 5] * h1[0]
        for k in range(1, 5):
            acc = acc + p_ref[_W2 + j * 5 + k] * h1[k]
        h2.append(jnp.maximum(acc + p_ref[_B2 + j], 0.0))

    # fc3 (3 -> 1), no activation
    out = p_ref[_W3] * h2[0]
    for k in range(1, 3):
        out = out + p_ref[_W3 + k] * h2[k]
    o_ref[...] = (out + p_ref[_B3]).astype(o_ref.dtype)


def _flatten_params(p):
    return jnp.concatenate([
        p["w1"].reshape(-1), p["b1"].reshape(-1),
        p["w2"].reshape(-1), p["b2"].reshape(-1),
        p["w3"].reshape(-1), p["b3"].reshape(-1),
    ]).astype(jnp.float32)


def mlp_forward(x, params, *, rows_per_tile=None):
    """x: (B, 4) float32 (PyTorch layout). Returns (B, 1) float32."""
    B = x.shape[0]

    # Lane-dense layout: each batch "row" is 128 samples riding the lane axis.
    R = pl.cdiv(B, 128)                             # 128-sample rows needed
    if rows_per_tile is None:
        rows_per_tile = min(16, pl.cdiv(R, 8) * 8)  # 8..16 rows = 1024..2048 samples/tile
    TR = max(8, rows_per_tile)
    R_pad = pl.cdiv(R, TR) * TR
    B_pad = R_pad * 128

    # (B,4) -> feature-major (4, B) -> pad -> (4, R_pad, 128): every feature plane is
    # a fully dense (R_pad, 128) slab; tail samples are zero-padded and dropped later.
    x_fm = jnp.transpose(x.astype(jnp.float32))              # (4, B)
    x_fm = jnp.pad(x_fm, ((0, 0), (0, B_pad - B)))           # (4, B_pad)
    x_fm = x_fm.reshape(4, R_pad, 128)

    p_flat = _flatten_params(params)                          # (47,) -> SMEM

    out_planes = pl.pallas_call(
        _mlp_kernel,
        out_shape=jax.ShapeDtypeStruct((R_pad, 128), jnp.float32),
        grid_spec=pltpu.PrefetchScalarGridSpec(
            num_scalar_prefetch=1,                            # p_flat -> SMEM, once
            grid=(R_pad // TR,),
            in_specs=[pl.BlockSpec((4, TR, 128), lambda i, p: (0, i, 0))],
            out_specs=pl.BlockSpec((TR, 128), lambda i, p: (i, 0)),
        ),
        compiler_params=pltpu.CompilerParams(
            dimension_semantics=("parallel",),                # megacore-shardable batch axis
        ),
    )(p_flat, x_fm)                                           # (R_pad, 128)

    return out_planes.reshape(B_pad)[:B].reshape(B, 1)


def init_params(key):
    """Deterministic init matching torch.nn.Linear shapes (weights (out,in), bias (out,))."""
    ks = jax.random.split(key, 6)

    def linear(kw, kb, fan_in, fan_out):
        bound = 1.0 / float(fan_in) ** 0.5
        w = jax.random.uniform(kw, (fan_out, fan_in), jnp.float32, -bound, bound)
        b = jax.random.uniform(kb, (fan_out,), jnp.float32, -bound, bound)
        return w, b

    w1, b1 = linear(ks[0], ks[1], 4, 5)
    w2, b2 = linear(ks[2], ks[3], 5, 3)
    w3, b3 = linear(ks[4], ks[5], 3, 1)
    return {"w1": w1, "b1": b1, "w2": w2, "b2": b2, "w3": w3, "b3": b3}


def mlp_reference(x, p):
    h1 = jnp.maximum(x @ p["w1"].T + p["b1"], 0.0)
    h2 = jnp.maximum(h1 @ p["w2"].T + p["b2"], 0.0)
    return h2 @ p["w3"].T + p["b3"]


if __name__ == "__main__":
    key = jax.random.PRNGKey(0)
    kx, kp = jax.random.split(key)

    batch = 8
    x = jax.random.normal(kx, (batch, 4), jnp.float32)
    params = init_params(kp)

    out = mlp_forward(x, params)
    jax.block_until_ready(out)

    ref = mlp_reference(x, params)
    assert out.shape == (batch, 1)
    assert jnp.allclose(out, ref, atol=1e-4, rtol=1e-4), "mismatch vs reference"

    print("KERNEL_OK")
</pallas_src>

<mosaic_0001>
module attributes {stable_mosaic.version = 11 : i64} {
  func.func @_mlp_kernel(%arg0: i32, %arg1: memref<47xf32, #tpu.memory_space<smem>>, %arg2: memref<4x8x128xf32, #tpu.memory_space<vmem>>, %arg3: memref<8x128xf32, #tpu.memory_space<vmem>>) attributes {dimension_semantics = [#tpu.dimension_semantics<parallel>], iteration_bounds = array<i64: 1>, scalar_prefetch = 1 : i64, scratch_operands = 0 : i64, tpu.core_type = #tpu.core_type<tc>, window_params = [{transform_indices = @transform_0, window_bounds = array<i64: 4, 8, 128>}, {transform_indices = @transform_1, window_bounds = array<i64: 8, 128>}]} {
    %c0 = arith.constant 0 : index
    %c0_0 = arith.constant 0 : index
    %c0_1 = arith.constant 0 : index
    %0 = vector.load %arg2[%c0, %c0_0, %c0_1] : memref<4x8x128xf32, #tpu.memory_space<vmem>>, vector<1x8x128xf32>
    %1 = vector.shape_cast %0 : vector<1x8x128xf32> to vector<8x128xf32>
    %c1 = arith.constant 1 : index
    %c0_2 = arith.constant 0 : index
    %c0_3 = arith.constant 0 : index
    %2 = vector.load %arg2[%c1, %c0_2, %c0_3] : memref<4x8x128xf32, #tpu.memory_space<vmem>>, vector<1x8x128xf32>
    %3 = vector.shape_cast %2 : vector<1x8x128xf32> to vector<8x128xf32>
    %c2 = arith.constant 2 : index
    %c0_4 = arith.constant 0 : index
    %c0_5 = arith.constant 0 : index
    %4 = vector.load %arg2[%c2, %c0_4, %c0_5] : memref<4x8x128xf32, #tpu.memory_space<vmem>>, vector<1x8x128xf32>
    %5 = vector.shape_cast %4 : vector<1x8x128xf32> to vector<8x128xf32>
    %c3 = arith.constant 3 : index
    %c0_6 = arith.constant 0 : index
    %c0_7 = arith.constant 0 : index
    %6 = vector.load %arg2[%c3, %c0_6, %c0_7] : memref<4x8x128xf32, #tpu.memory_space<vmem>>, vector<1x8x128xf32>
    %7 = vector.shape_cast %6 : vector<1x8x128xf32> to vector<8x128xf32>
    %c0_8 = arith.constant 0 : index
    %8 = memref.load %arg1[%c0_8] : memref<47xf32, #tpu.memory_space<smem>>
    %9 = vector.broadcast %8 : f32 to vector<8x128xf32>
    %10 = arith.mulf %9, %1 : vector<8x128xf32>
    %c1_9 = arith.constant 1 : index
    %11 = memref.load %arg1[%c1_9] : memref<47xf32, #tpu.memory_space<smem>>
    %12 = vector.broadcast %11 : f32 to vector<8x128xf32>
    %13 = arith.mulf %12, %3 : vector<8x128xf32>
    %14 = arith.addf %10, %13 : vector<8x128xf32>
    %c2_10 = arith.constant 2 : index
    %15 = memref.load %arg1[%c2_10] : memref<47xf32, #tpu.memory_space<smem>>
    %16 = vector.broadcast %15 : f32 to vector<8x128xf32>
    %17 = arith.mulf %16, %5 : vector<8x128xf32>
    %18 = arith.addf %14, %17 : vector<8x128xf32>
    %c3_11 = arith.constant 3 : index
    %19 = memref.load %arg1[%c3_11] : memref<47xf32, #tpu.memory_space<smem>>
    %20 = vector.broadcast %19 : f32 to vector<8x128xf32>
    %21 = arith.mulf %20, %7 : vector<8x128xf32>
    %22 = arith.addf %18, %21 : vector<8x128xf32>
    %c20 = arith.constant 20 : index
    %23 = memref.load %arg1[%c20] : memref<47xf32, #tpu.memory_space<smem>>
    %24 = vector.broadcast %23 : f32 to vector<8x128xf32>
    %25 = arith.addf %22, %24 : vector<8x128xf32>
    %cst = arith.constant 0.000000e+00 : f32
    %26 = vector.broadcast %cst : f32 to vector<8x128xf32>
    %27 = arith.maximumf %25, %26 : vector<8x128xf32>
    %c4 = arith.constant 4 : index
    %28 = memref.load %arg1[%c4] : memref<47xf32, #tpu.memory_space<smem>>
    %29 = vector.broadcast %28 : f32 to vector<8x128xf32>
    %30 = arith.mulf %29, %1 : vector<8x128xf32>
    %c5 = arith.constant 5 : index
    %31 = memref.load %arg1[%c5] : memref<47xf32, #tpu.memory_space<smem>>
    %32 = vector.broadcast %31 : f32 to vector<8x128xf32>
    %33 = arith.mulf %32, %3 : vector<8x128xf32>
    %34 = arith.addf %30, %33 : vector<8x128xf32>
    %c6 = arith.constant 6 : index
    %35 = memref.load %arg1[%c6] : memref<47xf32, #tpu.memory_space<smem>>
    %36 = vector.broadcast %35 : f32 to vector<8x128xf32>
    %37 = arith.mulf %36, %5 : vector<8x128xf32>
    %38 = arith.addf %34, %37 : vector<8x128xf32>
    %c7 = arith.constant 7 : index
    %39 = memref.load %arg1[%c7] : memref<47xf32, #tpu.memory_space<smem>>
    %40 = vector.broadcast %39 : f32 to vector<8x128xf32>
    %41 = arith.mulf %40, %7 : vector<8x128xf32>
    %42 = arith.addf %38, %41 : vector<8x128xf32>
    %c21 = arith.constant 21 : index
    %43 = memref.load %arg1[%c21] : memref<47xf32, #tpu.memory_space<smem>>
    %44 = vector.broadcast %43 : f32 to vector<8x128xf32>
    %45 = arith.addf %42, %44 : vector<8x128xf32>
    %cst_12 = arith.constant 0.000000e+00 : f32
    %46 = vector.broadcast %cst_12 : f32 to vector<8x128xf32>
    %47 = arith.maximumf %45, %46 : vector<8x128xf32>
    %c8 = arith.constant 8 : index
    %48 = memref.load %arg1[%c8] : memref<47xf32, #tpu.memory_space<smem>>
    %49 = vector.broadcast %48 : f32 to vector<8x128xf32>
    %50 = arith.mulf %49, %1 : vector<8x128xf32>
    %c9 = arith.constant 9 : index
    %51 = memref.load %arg1[%c9] : memref<47xf32, #tpu.memory_space<smem>>
    %52 = vector.broadcast %51 : f32 to vector<8x128xf32>
    %53 = arith.mulf %52, %3 : vector<8x128xf32>
    %54 = arith.addf %50, %53 : vector<8x128xf32>
    %c10 = arith.constant 10 : index
    %55 = memref.load %arg1[%c10] : memref<47xf32, #tpu.memory_space<smem>>
    %56 = vector.broadcast %55 : f32 to vector<8x128xf32>
    %57 = arith.mulf %56, %5 : vector<8x128xf32>
    %58 = arith.addf %54, %57 : vector<8x128xf32>
    %c11 = arith.constant 11 : index
    %59 = memref.load %arg1[%c11] : memref<47xf32, #tpu.memory_space<smem>>
    %60 = vector.broadcast %59 : f32 to vector<8x128xf32>
    %61 = arith.mulf %60, %7 : vector<8x128xf32>
    %62 = arith.addf %58, %61 : vector<8x128xf32>
    %c22 = arith.constant 22 : index
    %63 = memref.load %arg1[%c22] : memref<47xf32, #tpu.memory_space<smem>>
    %64 = vector.broadcast %63 : f32 to vector<8x128xf32>
    %65 = arith.addf %62, %64 : vector<8x128xf32>
    %cst_13 = arith.constant 0.000000e+00 : f32
    %66 = vector.broadcast %cst_13 : f32 to vector<8x128xf32>
    %67 = arith.maximumf %65, %66 : vector<8x128xf32>
    %c12 = arith.constant 12 : index
    %68 = memref.load %arg1[%c12] : memref<47xf32, #tpu.memory_space<smem>>
    %69 = vector.broadcast %68 : f32 to vector<8x128xf32>
    %70 = arith.mulf %69, %1 : vector<8x128xf32>
    %c13 = arith.constant 13 : index
    %71 = memref.load %arg1[%c13] : memref<47xf32, #tpu.memory_space<smem>>
    %72 = vector.broadcast %71 : f32 to vector<8x128xf32>
    %73 = arith.mulf %72, %3 : vector<8x128xf32>
    %74 = arith.addf %70, %73 : vector<8x128xf32>
    %c14 = arith.constant 14 : index
    %75 = memref.load %arg1[%c14] : memref<47xf32, #tpu.memory_space<smem>>
    %76 = vector.broadcast %75 : f32 to vector<8x128xf32>
    %77 = arith.mulf %76, %5 : vector<8x128xf32>
    %78 = arith.addf %74, %77 : vector<8x128xf32>
    %c15 = arith.constant 15 : index
    %79 = memref.load %arg1[%c15] : memref<47xf32, #tpu.memory_space<smem>>
    %80 = vector.broadcast %79 : f32 to vector<8x128xf32>
    %81 = arith.mulf %80, %7 : vector<8x128xf32>
    %82 = arith.addf %78, %81 : vector<8x128xf32>
    %c23 = arith.constant 23 : index
    %83 = memref.load %arg1[%c23] : memref<47xf32, #tpu.memory_space<smem>>
    %84 = vector.broadcast %83 : f32 to vector<8x128xf32>
    %85 = arith.addf %82, %84 : vector<8x128xf32>
    %cst_14 = arith.constant 0.000000e+00 : f32
    %86 = vector.broadcast %cst_14 : f32 to vector<8x128xf32>
    %87 = arith.maximumf %85, %86 : vector<8x128xf32>
    %c16 = arith.constant 16 : index
    %88 = memref.load %arg1[%c16] : memref<47xf32, #tpu.memory_space<smem>>
    %89 = vector.broadcast %88 : f32 to vector<8x128xf32>
    %90 = arith.mulf %89, %1 : vector<8x128xf32>
    %c17 = arith.constant 17 : index
    %91 = memref.load %arg1[%c17] : memref<47xf32, #tpu.memory_space<smem>>
    %92 = vector.broadcast %91 : f32 to vector<8x128xf32>
    %93 = arith.mulf %92, %3 : vector<8x128xf32>
    %94 = arith.addf %90, %93 : vector<8x128xf32>
    %c18 = arith.constant 18 : index
    %95 = memref.load %arg1[%c18] : memref<47xf32, #tpu.memory_space<smem>>
    %96 = vector.broadcast %95 : f32 to vector<8x128xf32>
    %97 = arith.mulf %96, %5 : vector<8x128xf32>
    %98 = arith.addf %94, %97 : vector<8x128xf32>
    %c19 = arith.constant 19 : index
    %99 = memref.load %arg1[%c19] : memref<47xf32, #tpu.memory_space<smem>>
    %100 = vector.broadcast %99 : f32 to vector<8x128xf32>
    %101 = arith.mulf %100, %7 : vector<8x128xf32>
    %102 = arith.addf %98, %101 : vector<8x128xf32>
    %c24 = arith.constant 24 : index
    %103 = memref.load %arg1[%c24] : memref<47xf32, #tpu.memory_space<smem>>
    %104 = vector.broadcast %103 : f32 to vector<8x128xf32>
    %105 = arith.addf %102, %104 : vector<8x128xf32>
    %cst_15 = arith.constant 0.000000e+00 : f32
    %106 = vector.broadcast %cst_15 : f32 to vector<8x128xf32>
    %107 = arith.maximumf %105, %106 : vector<8x128xf32>
    %c25 = arith.constant 25 : index
    %108 = memref.load %arg1[%c25] : memref<47xf32, #tpu.memory_space<smem>>
    %109 = vector.broadcast %108 : f32 to vector<8x128xf32>
    %110 = arith.mulf %109, %27 : vector<8x128xf32>
    %c26 = arith.constant 26 : index
    %111 = memref.load %arg1[%c26] : memref<47xf32, #tpu.memory_space<smem>>
    %112 = vector.broadcast %111 : f32 to vector<8x128xf32>
    %113 = arith.mulf %112, %47 : vector<8x128xf32>
    %114 = arith.addf %110, %113 : vector<8x128xf32>
    %c27 = arith.constant 27 : index
    %115 = memref.load %arg1[%c27] : memref<47xf32, #tpu.memory_space<smem>>
    %116 = vector.broadcast %115 : f32 to vector<8x128xf32>
    %117 = arith.mulf %116, %67 : vector<8x128xf32>
    %118 = arith.addf %114, %117 : vector<8x128xf32>
    %c28 = arith.constant 28 : index
    %119 = memref.load %arg1[%c28] : memref<47xf32, #tpu.memory_space<smem>>
    %120 = vector.broadcast %119 : f32 to vector<8x128xf32>
    %121 = arith.mulf %120, %87 : vector<8x128xf32>
    %122 = arith.addf %118, %121 : vector<8x128xf32>
    %c29 = arith.constant 29 : index
    %123 = memref.load %arg1[%c29] : memref<47xf32, #tpu.memory_space<smem>>
    %124 = vector.broadcast %123 : f32 to vector<8x128xf32>
    %125 = arith.mulf %124, %107 : vector<8x128xf32>
    %126 = arith.addf %122, %125 : vector<8x128xf32>
    %c40 = arith.constant 40 : index
    %127 = memref.load %arg1[%c40] : memref<47xf32, #tpu.memory_space<smem>>
    %128 = vector.broadcast %127 : f32 to vector<8x128xf32>
    %129 = arith.addf %126, %128 : vector<8x128xf32>
    %cst_16 = arith.constant 0.000000e+00 : f32
    %130 = vector.broadcast %cst_16 : f32 to vector<8x128xf32>
    %131 = arith.maximumf %129, %130 : vector<8x128xf32>
    %c30 = arith.constant 30 : index
    %132 = memref.load %arg1[%c30] : memref<47xf32, #tpu.memory_space<smem>>
    %133 = vector.broadcast %132 : f32 to vector<8x128xf32>
    %134 = arith.mulf %133, %27 : vector<8x128xf32>
    %c31 = arith.constant 31 : index
    %135 = memref.load %arg1[%c31] : memref<47xf32, #tpu.memory_space<smem>>
    %136 = vector.broadcast %135 : f32 to vector<8x128xf32>
    %137 = arith.mulf %136, %47 : vector<8x128xf32>
    %138 = arith.addf %134, %137 : vector<8x128xf32>
    %c32 = arith.constant 32 : index
    %139 = memref.load %arg1[%c32] : memref<47xf32, #tpu.memory_space<smem>>
    %140 = vector.broadcast %139 : f32 to vector<8x128xf32>
    %141 = arith.mulf %140, %67 : vector<8x128xf32>
    %142 = arith.addf %138, %141 : vector<8x128xf32>
    %c33 = arith.constant 33 : index
    %143 = memref.load %arg1[%c33] : memref<47xf32, #tpu.memory_space<smem>>
    %144 = vector.broadcast %143 : f32 to vector<8x128xf32>
    %145 = arith.mulf %144, %87 : vector<8x128xf32>
    %146 = arith.addf %142, %145 : vector<8x128xf32>
    %c34 = arith.constant 34 : index
    %147 = memref.load %arg1[%c34] : memref<47xf32, #tpu.memory_space<smem>>
    %148 = vector.broadcast %147 : f32 to vector<8x128xf32>
    %149 = arith.mulf %148, %107 : vector<8x128xf32>
    %150 = arith.addf %146, %149 : vector<8x128xf32>
    %c41 = arith.constant 41 : index
    %151 = memref.load %arg1[%c41] : memref<47xf32, #tpu.memory_space<smem>>
    %152 = vector.broadcast %151 : f32 to vector<8x128xf32>
    %153 = arith.addf %150, %152 : vector<8x128xf32>
    %cst_17 = arith.constant 0.000000e+00 : f32
    %154 = vector.broadcast %cst_17 : f32 to vector<8x128xf32>
    %155 = arith.maximumf %153, %154 : vector<8x128xf32>
    %c35 = arith.constant 35 : index
    %156 = memref.load %arg1[%c35] : memref<47xf32, #tpu.memory_space<smem>>
    %157 = vector.broadcast %156 : f32 to vector<8x128xf32>
    %158 = arith.mulf %157, %27 : vector<8x128xf32>
    %c36 = arith.constant 36 : index
    %159 = memref.load %arg1[%c36] : memref<47xf32, #tpu.memory_space<smem>>
    %160 = vector.broadcast %159 : f32 to vector<8x128xf32>
    %161 = arith.mulf %160, %47 : vector<8x128xf32>
    %162 = arith.addf %158, %161 : vector<8x128xf32>
    %c37 = arith.constant 37 : index
    %163 = memref.load %arg1[%c37] : memref<47xf32, #tpu.memory_space<smem>>
    %164 = vector.broadcast %163 : f32 to vector<8x128xf32>
    %165 = arith.mulf %164, %67 : vector<8x128xf32>
    %166 = arith.addf %162, %165 : vector<8x128xf32>
    %c38 = arith.constant 38 : index
    %167 = memref.load %arg1[%c38] : memref<47xf32, #tpu.memory_space<smem>>
    %168 = vector.broadcast %167 : f32 to vector<8x128xf32>
    %169 = arith.mulf %168, %87 : vector<8x128xf32>
    %170 = arith.addf %166, %169 : vector<8x128xf32>
    %c39 = arith.constant 39 : index
    %171 = memref.load %arg1[%c39] : memref<47xf32, #tpu.memory_space<smem>>
    %172 = vector.broadcast %171 : f32 to vector<8x128xf32>
    %173 = arith.mulf %172, %107 : vector<8x128xf32>
    %174 = arith.addf %170, %173 : vector<8x128xf32>
    %c42 = arith.constant 42 : index
    %175 = memref.load %arg1[%c42] : memref<47xf32, #tpu.memory_space<smem>>
    %176 = vector.broadcast %175 : f32 to vector<8x128xf32>
    %177 = arith.addf %174, %176 : vector<8x128xf32>
    %cst_18 = arith.constant 0.000000e+00 : f32
    %178 = vector.broadcast %cst_18 : f32 to vector<8x128xf32>
    %179 = arith.maximumf %177, %178 : vector<8x128xf32>
    %c43 = arith.constant 43 : index
    %180 = memref.load %arg1[%c43] : memref<47xf32, #tpu.memory_space<smem>>
    %181 = vector.broadcast %180 : f32 to vector<8x128xf32>
    %182 = arith.mulf %181, %131 : vector<8x128xf32>
    %c44 = arith.constant 44 : index
    %183 = memref.load %arg1[%c44] : memref<47xf32, #tpu.memory_space<smem>>
    %184 = vector.broadcast %183 : f32 to vector<8x128xf32>
    %185 = arith.mulf %184, %155 : vector<8x128xf32>
    %186 = arith.addf %182, %185 : vector<8x128xf32>
    %c45 = arith.constant 45 : index
    %187 = memref.load %arg1[%c45] : memref<47xf32, #tpu.memory_space<smem>>
    %188 = vector.broadcast %187 : f32 to vector<8x128xf32>
    %189 = arith.mulf %188, %179 : vector<8x128xf32>
    %190 = arith.addf %186, %189 : vector<8x128xf32>
    %c46 = arith.constant 46 : index
    %191 = memref.load %arg1[%c46] : memref<47xf32, #tpu.memory_space<smem>>
    %192 = vector.broadcast %191 : f32 to vector<8x128xf32>
    %193 = arith.addf %190, %192 : vector<8x128xf32>
    %c0_19 = arith.constant 0 : index
    %c0_20 = arith.constant 0 : index
    %194 = vector.load %arg3[%c0_19, %c0_20] : memref<8x128xf32, #tpu.memory_space<vmem>>, vector<8x128xf32>
    tpu.vector_store %arg3[%c0_19, %c0_20], %193 {strides = array<i32>} : memref<8x128xf32, #tpu.memory_space<vmem>>, vector<8x128xf32>,
    return
  }
  func.func @transform_0(%arg0: i32, %arg1: memref<47xf32, #tpu.memory_space<smem>>) -> (i32, i32, i32) {
    %c0_i32 = arith.constant 0 : i32
    %c0_i32_0 = arith.constant 0 : i32
    %c0_i32_1 = arith.constant 0 : i32
    return %c0_i32, %arg0, %c0_i32_0 : i32, i32, i32
  }
  func.func @transform_1(%arg0: i32, %arg1: memref<47xf32, #tpu.memory_space<smem>>) -> (i32, i32) {
    %c0_i32 = arith.constant 0 : i32
    %c0_i32_0 = arith.constant 0 : i32
    return %arg0, %c0_i32 : i32, i32
  }
}

</mosaic_0001>

<llo_original>
// kernel: tpu_custom_call.1
$region0: #{tpu_custom_call.1}
  #allocation0 [shape = 'u32[]', space=smem, size = 0x4, offset = 0x4, fixed_abs, tag = 'smem constant byte address 0x4 - core index']
  #allocation1 [shape = 'u32[72,128]{1,0:T(1,128)}', space=vmem, size = 0x9000, scoped, tag = 'internal scratch']
  #allocation2 [shape = 's32[1]{0}', space=sflag, size = 0x4, scoped, tag = 'scoped memory for tpu_custom_call.1']
  #allocation3 [shape = 'u8[512]{0}', space=smem, size = 0x200, scoped, tag = 'prefetched SMEM operand 0']
  %s0 = inlined_call_operand.hbm [shape: f32[47], index: 0, kind: input, shape index: {}]
  %s1 = inlined_call_operand.hbm [shape: f32[4,8,128], index: 1, kind: input, shape index: {}]
  %s2 = inlined_call_operand.hbm [shape: f32[8,128], index: 2, kind: output, shape index: {}]
  %s3 = sld [smem:[#allocation0]]
  $region18: #{tpu_custom_call.1} parent=0
    _
  %s5 = ssub.s32 1, %s3
  %s6 = scalar_select 0, %s5, %s3
  %s8 = sshll.u32 %s0, 4
  %s9 = int_to_ptr.hbm [resolvable:$true] %s8
  %11 = dma.hbm_to_smem %s9, 16, [#allocation3], [#allocation2]
  %13 = dma.done [#allocation2], 16
  %14 = sfence
  $region1: #{tpu_custom_call.1} parent=0
    #allocation4 [shape = 'u8[16384]{0}', space=vmem, size = 0x4000, scoped, tag = 'input window, operand 1, single buffered']
    #allocation5 [shape = 's32[1]{0}', space=sflag, size = 0x4, scoped, tag = 'scoped memory for tpu_custom_call.1']
    #allocation6 [shape = 's32[1]{0}', space=sflag, size = 0x4, scoped, tag = 'scoped memory for tpu_custom_call.1']
    #allocation7 [shape = 'u8[4096]{0}', space=vmem, size = 0x1000, scoped, tag = 'output window, operand 0, single buffered']
    %15 = vsyncpa [#allocation5], 0
    %16 = vsyncpa [#allocation6], 0
    // Predicated region
    $region2: #{tpu_custom_call.1} parent=1 // pred_check
      _
    $region3: #{tpu_custom_call.1} parent=1 // pred_check_branch
      %18 = sbr.rel (0) target = $region5
    $region4: #{tpu_custom_call.1} parent=1 // pred_region
      %20 = vsyncadd [#allocation5], 0
      %s21 = sshll.u32 %s1, 4
      %s22 = int_to_ptr.hbm [resolvable:$true] %s21
      %s23 = sshll.u32 [#allocation4], 4
      %s24 = int_to_ptr.vmem [resolvable:$true] %s23
      %29 = dma.hbm_to_vmem [thread:$0]  %s22, 512, %s24, [#allocation5], 128, 128, 8
    $region5: #{tpu_custom_call.1} parent=1 // pred_fallthru
      _
    // Predicated region
    $region6: #{tpu_custom_call.1} parent=1 // pred_check
      _
    $region7: #{tpu_custom_call.1} parent=1 // pred_check_branch
      %31 = sbr.rel (0) target = $region9
    $region8: #{tpu_custom_call.1} parent=1 // pred_region
      %33 = dma.done [#allocation5], 512
    $region9: #{tpu_custom_call.1} parent=1 // pred_fallthru
      _
    %v34 = vld [vmem:[#allocation4] sm:$0xff]
    %s35 = scalar_lea.vmem [#allocation4], 8
    %v36 = vld [vmem:[%s35] sm:$0xff]
    %s37 = scalar_lea.vmem [#allocation4], 16
    %v38 = vld [vmem:[%s37] sm:$0xff]
    %s39 = scalar_lea.vmem [#allocation4], 24
    %v40 = vld [vmem:[%s39] sm:$0xff]
    %s41 = sld [smem:[#allocation3]]
    %v42 = vstv %s41
    %v43 = vmul.f32 %v42, %v34
    %s44 = sld [smem:[#allocation3 + $0x1]]
    %v45 = vstv %s44
    %v46 = vmul.f32 %v45, %v36
    %v47 = vadd.f32 %v43, %v46
    %s48 = sld [smem:[#allocation3 + $0x2]]
    %v49 = vstv %s48
    %v50 = vmul.f32 %v49, %v38
    %v51 = vadd.f32 %v47, %v50
    %s52 = sld [smem:[#allocation3 + $0x3]]
    %v53 = vstv %s52
    %v54 = vmul.f32 %v53, %v40
    %v55 = vadd.f32 %v51, %v54
    %s56 = sld [smem:[#allocation3 + $0x14]]
    %v57 = vstv %s56
    %v58 = vadd.f32 %v55, %v57
    %v59 = vmax.f32 %v58, 0.0
    %s60 = sld [smem:[#allocation3 + $0x4]]
    %v61 = vstv %s60
    %v62 = vmul.f32 %v61, %v34
    %s63 = sld [smem:[#allocation3 + $0x5]]
    %v64 = vstv %s63
    %v65 = vmul.f32 %v64, %v36
    %v66 = vadd.f32 %v62, %v65
    %s67 = sld [smem:[#allocation3 + $0x6]]
    %v68 = vstv %s67
    %v69 = vmul.f32 %v68, %v38
    %v70 = vadd.f32 %v66, %v69
    %s71 = sld [smem:[#allocation3 + $0x7]]
    %v72 = vstv %s71
    %v73 = vmul.f32 %v72, %v40
    %v74 = vadd.f32 %v70, %v73
    %s75 = sld [smem:[#allocation3 + $0x15]]
    %v76 = vstv %s75
    %v77 = vadd.f32 %v74, %v76
    %v78 = vmax.f32 %v77, 0.0
    %s79 = sld [smem:[#allocation3 + $0x8]]
    %v80 = vstv %s79
    %v81 = vmul.f32 %v80, %v34
    %s82 = sld [smem:[#allocation3 + $0x9]]
    %v83 = vstv %s82
    %v84 = vmul.f32 %v83, %v36
    %v85 = vadd.f32 %v81, %v84
    %s86 = sld [smem:[#allocation3 + $0xa]]
    %v87 = vstv %s86
    %v88 = vmul.f32 %v87, %v38
    %v89 = vadd.f32 %v85, %v88
    %s90 = sld [smem:[#allocation3 + $0xb]]
    %v91 = vstv %s90
    %v92 = vmul.f32 %v91, %v40
    %v93 = vadd.f32 %v89, %v92
    %s94 = sld [smem:[#allocation3 + $0x16]]
    %v95 = vstv %s94
    %v96 = vadd.f32 %v93, %v95
    %v97 = vmax.f32 %v96, 0.0
    %s98 = sld [smem:[#allocation3 + $0xc]]
    %v99 = vstv %s98
    %v100 = vmul.f32 %v99, %v34
    %s101 = sld [smem:[#allocation3 + $0xd]]
    %v102 = vstv %s101
    %v103 = vmul.f32 %v102, %v36
    %v104 = vadd.f32 %v100, %v103
    %s105 = sld [smem:[#allocation3 + $0xe]]
    %v106 = vstv %s105
    %v107 = vmul.f32 %v106, %v38
    %v108 = vadd.f32 %v104, %v107
    %s109 = sld [smem:[#allocation3 + $0xf]]
    %v110 = vstv %s109
    %v111 = vmul.f32 %v110, %v40
    %v112 = vadd.f32 %v108, %v111
    %s113 = sld [smem:[#allocation3 + $0x17]]
    %v114 = vstv %s113
    %v115 = vadd.f32 %v112, %v114
    %v116 = vmax.f32 %v115, 0.0
    %s117 = sld [smem:[#allocation3 + $0x10]]
    %v118 = vstv %s117
    %v119 = vmul.f32 %v118, %v34
    %s120 = sld [smem:[#allocation3 + $0x11]]
    %v121 = vstv %s120
    %v122 = vmul.f32 %v121, %v36
    %v123 = vadd.f32 %v119, %v122
    %s124 = sld [smem:[#allocation3 + $0x12]]
    %v125 = vstv %s124
    %v126 = vmul.f32 %v125, %v38
    %v127 = vadd.f32 %v123, %v126
    %s128 = sld [smem:[#allocation3 + $0x13]]
    %v129 = vstv %s128
    %v130 = vmul.f32 %v129, %v40
    %v131 = vadd.f32 %v127, %v130
    %s132 = sld [smem:[#allocation3 + $0x18]]
    %v133 = vstv %s132
    %v134 = vadd.f32 %v131, %v133
    %v135 = vmax.f32 %v134, 0.0
    %s136 = sld [smem:[#allocation3 + $0x19]]
    %v137 = vstv %s136
    %v138 = vmul.f32 %v137, %v59
    %s139 = sld [smem:[#allocation3 + $0x1a]]
    %v140 = vstv %s139
    %v141 = vmul.f32 %v140, %v78
    %v142 = vadd.f32 %v138, %v141
    %s143 = sld [smem:[#allocation3 + $0x1b]]
    %v144 = vstv %s143
    %v145 = vmul.f32 %v144, %v97
    %v146 = vadd.f32 %v142, %v145
    %s147 = sld [smem:[#allocation3 + $0x1c]]
    %v148 = vstv %s147
    %v149 = vmul.f32 %v148, %v116
    %v150 = vadd.f32 %v146, %v149
    %s151 = sld [smem:[#allocation3 + $0x1d]]
    %v152 = vstv %s151
    %v153 = vmul.f32 %v152, %v135
    %v154 = vadd.f32 %v150, %v153
    %s155 = sld [smem:[#allocation3 + $0x28]]
    %v156 = vstv %s155
    %v157 = vadd.f32 %v154, %v156
    %v158 = vmax.f32 %v157, 0.0
    %s159 = sld [smem:[#allocation3 + $0x1e]]
    %v160 = vstv %s159
    %v161 = vmul.f32 %v160, %v59
    %s162 = sld [smem:[#allocation3 + $0x1f]]
    %v163 = vstv %s162
    %v164 = vmul.f32 %v163, %v78
    %v165 = vadd.f32 %v161, %v164
    %s166 = sld [smem:[#allocation3 + $0x20]]
    %v167 = vstv %s166
    %v168 = vmul.f32 %v167, %v97
    %v169 = vadd.f32 %v165, %v168
    %s170 = sld [smem:[#allocation3 + $0x21]]
    %v171 = vstv %s170
    %v172 = vmul.f32 %v171, %v116
    %v173 = vadd.f32 %v169, %v172
    %s174 = sld [smem:[#allocation3 + $0x22]]
    %v175 = vstv %s174
    %v176 = vmul.f32 %v175, %v135
    %v177 = vadd.f32 %v173, %v176
    %s178 = sld [smem:[#allocation3 + $0x29]]
    %v179 = vstv %s178
    %v180 = vadd.f32 %v177, %v179
    %v181 = vmax.f32 %v180, 0.0
    %s182 = sld [smem:[#allocation3 + $0x23]]
    %v183 = vstv %s182
    %v184 = vmul.f32 %v183, %v59
    %s185 = sld [smem:[#allocation3 + $0x24]]
    %v186 = vstv %s185
    %v187 = vmul.f32 %v186, %v78
    %v188 = vadd.f32 %v184, %v187
    %s189 = sld [smem:[#allocation3 + $0x25]]
    %v190 = vstv %s189
    %v191 = vmul.f32 %v190, %v97
    %v192 = vadd.f32 %v188, %v191
    %s193 = sld [smem:[#allocation3 + $0x26]]
    %v194 = vstv %s193
    %v195 = vmul.f32 %v194, %v116
    %v196 = vadd.f32 %v192, %v195
    %s197 = sld [smem:[#allocation3 + $0x27]]
    %v198 = vstv %s197
    %v199 = vmul.f32 %v198, %v135
    %v200 = vadd.f32 %v196, %v199
    %s201 = sld [smem:[#allocation3 + $0x2a]]
    %v202 = vstv %s201
    %v203 = vadd.f32 %v200, %v202
    %v204 = vmax.f32 %v203, 0.0
    %s205 = sld [smem:[#allocation3 + $0x2b]]
    %v206 = vstv %s205
    %v207 = vmul.f32 %v206, %v158
    %s208 = sld [smem:[#allocation3 + $0x2c]]
    %v209 = vstv %s208
    %v210 = vmul.f32 %v209, %v181
    %v211 = vadd.f32 %v207, %v210
    %s212 = sld [smem:[#allocation3 + $0x2d]]
    %v213 = vstv %s212
    %v214 = vmul.f32 %v213, %v204
    %v215 = vadd.f32 %v211, %v214
    %s216 = sld [smem:[#allocation3 + $0x2e]]
    %v217 = vstv %s216
    %v218 = vadd.f32 %v215, %v217
    %219 = vst [vmem:[#allocation7] sm:$0xff] %v218
    // Predicated region
    $region10: #{tpu_custom_call.1} parent=1 // pred_check
      _
    $region11: #{tpu_custom_call.1} parent=1 // pred_check_branch
      %221 = sbr.rel (0) target = $region13
    $region12: #{tpu_custom_call.1} parent=1 // pred_region
      %223 = vsyncadd [#allocation6], 0
      %s225 = sshll.u32 [#allocation7], 4
      %s226 = int_to_ptr.vmem [resolvable:$true] %s225
      %s227 = sshll.u32 %s2, 4
      %s228 = int_to_ptr.hbm [resolvable:$true] %s227
      %230 = dma.vmem_to_hbm [thread:$0]  %s226, 128, %s228, [#allocation6]
    $region13: #{tpu_custom_call.1} parent=1 // pred_fallthru
      _
    // Predicated region
    $region14: #{tpu_custom_call.1} parent=1 // pred_check
      _
    $region15: #{tpu_custom_call.1} parent=1 // pred_check_branch
      %232 = sbr.rel (0) target = $region17
    $region16: #{tpu_custom_call.1} parent=1 // pred_region
      %234 = dma.done [#allocation6], 128
    $region17: #{tpu_custom_call.1} parent=1 // pred_fallthru
      _
    %235 = vsyncpa [#allocation5], 1
    %236 = vsyncpa [#allocation6], 1

</llo_original>
